<compile_context>
chip_gen: v6e
topology: v6e:2x2x1
jax: 0.10.0
libtpu: 0.0.40
codegen_flags: <defaults>
</compile_context>

<pallas_src>
import functools

import jax
import jax.numpy as jnp
from jax import lax
from jax.experimental import pallas as pl
from jax.experimental.pallas import tpu as pltpu


def _backflow_kernel_body(w_ref, r_ref, out_ref, *, nelec: int, derivative: int):
    """Element-wise hot path on one lane-dense (B_TILE, Nelec*Nelec) slab."""
    r = r_ref[...].astype(jnp.float32)                 # compute in f32 even for bf16 inputs

    # flat pair index k = i*Nelec + j  ->  diagonal (i == j) iff k % (Nelec+1) == 0
    lane = lax.broadcasted_iota(jnp.int32, r.shape, 1)
    diag = (lane % (nelec + 1)) == 0

    w = w_ref[0]                                       # scalar weight from SMEM
    safe_r = jnp.where(diag, 1.0, r)                   # avoid 1/0 on the diagonal
    inv = 1.0 / safe_r

    if derivative == 0:
        coef, invp = w, inv
    elif derivative == 1:
        coef, invp = -w, inv * inv
    else:  # derivative == 2
        coef, invp = 2.0 * w, inv * inv * inv

    out_ref[...] = jnp.where(diag, 0.0, coef * invp).astype(out_ref.dtype)


def _choose_batch_tile(nbatch: int, ne2: int, itemsize: int) -> int:
    """Batch tile: sublane-aligned (x8), ~2 MiB blocks, >=2 grid steps when possible.

    ~2 MiB blocks keep the double-buffered working set (2 bufs x (in + out))
    around 8 MiB, inside the scoped-VMEM defaults on v5e/v6e/v7x.
    """
    if nbatch <= 8:
        return nbatch                                  # block spans the full (small) batch dim
    target = max(1, (2 * 1024 * 1024) // (ne2 * itemsize))
    bt = max(8, (target // 8) * 8)
    # keep at least 2 grid iterations so both v7x TensorCores get work
    half = ((nbatch + 1) // 2 + 7) // 8 * 8
    bt = min(bt, half)
    return max(bt, 8)


def backflow_kernel(ree: jax.Array, weight: jax.Array, derivative: int = 0) -> jax.Array:
    """f(r_ee) of shape (Nbatch, Nelec, Nelec), like BackFlowKernelBase.forward."""
    if derivative not in (0, 1, 2):
        raise ValueError("derivative of the kernel must be 0, 1 or 2")

    nbatch, nelec, _ = ree.shape
    ne2 = nelec * nelec
    itemsize = jnp.dtype(ree.dtype).itemsize

    # lane-dense layout: one batch's full pair matrix along the lane axis
    r2 = ree.reshape(nbatch, ne2)

    bt = _choose_batch_tile(nbatch, ne2, itemsize)
    nb_pad = -(-nbatch // bt) * bt
    if nb_pad != nbatch:
        # pad with 1.0 (not 0) so padded rows stay finite; they are sliced off below
        r2 = jnp.pad(r2, ((0, nb_pad - nbatch), (0, 0)), constant_values=1.0)

    # robust to weight arriving as (), (1,), or (1, 1)
    w = jnp.asarray(weight, dtype=jnp.float32).reshape(-1)[:1]

    kernel = functools.partial(_backflow_kernel_body, nelec=nelec, derivative=derivative)
    total = nbatch * ne2

    out2 = pl.pallas_call(
        kernel,
        out_shape=jax.ShapeDtypeStruct((nb_pad, ne2), ree.dtype),
        grid_spec=pltpu.PrefetchScalarGridSpec(
            num_scalar_prefetch=0,
            grid=(nb_pad // bt,),
            in_specs=[
                # scalar weight lives in SMEM, untiled
                pl.BlockSpec(memory_space=pltpu.SMEM),
                # multi-batch lane-dense slab per grid step
                pl.BlockSpec((bt, ne2), lambda b: (b, 0)),
            ],
            out_specs=pl.BlockSpec((bt, ne2), lambda b: (b, 0)),
        ),
        compiler_params=pltpu.CompilerParams(
            dimension_semantics=("parallel",),
        ),
        cost_estimate=pl.CostEstimate(
            flops=6 * total,
            transcendentals=total,
            bytes_accessed=2 * total * itemsize,
        ),
    )(w, r2)

    return out2[:nbatch].reshape(nbatch, nelec, nelec)


def _reference(ree, weight, derivative):
    """Pure-JAX reference for correctness check."""
    ne = ree.shape[-1]
    eye = jnp.eye(ne, dtype=ree.dtype)
    mask = 1.0 - eye
    w = jnp.asarray(weight, dtype=jnp.float32).reshape(-1)[0]
    inv = 1.0 / (ree + eye)
    if derivative == 0:
        return w * mask * inv
    if derivative == 1:
        return -w * mask * inv**2
    return 2.0 * w * mask * inv**3


if __name__ == "__main__":
    key = jax.random.PRNGKey(0)
    nbatch, nelec, ndim = 4, 8, 3

    # Deterministic electron positions -> e-e distance matrix (Nbatch, Nelec, Nelec)
    pos = jax.random.normal(key, (nbatch, nelec, ndim), dtype=jnp.float32)
    diff = pos[:, :, None, :] - pos[:, None, :, :]
    ree = jnp.sqrt(jnp.sum(diff * diff, axis=-1) + 1e-12)
    ree = ree * (1.0 - jnp.eye(nelec, dtype=jnp.float32))  # exact zeros on diagonal

    # Deterministic parameter init (the inverse kernel has a single scalar weight)
    weight = jnp.array([1.0], dtype=jnp.float32)

    ok = True
    for deriv in (0, 1, 2):
        out = backflow_kernel(ree, weight, derivative=deriv)
        out = jax.block_until_ready(out)
        ref = _reference(ree, weight, deriv)
        ok &= bool(jnp.allclose(out, ref, atol=1e-5, rtol=1e-5))

    if ok:
        print("KERNEL_OK")
    else:
        print("KERNEL_MISMATCH")
</pallas_src>

<mosaic_0001>
module attributes {stable_mosaic.version = 11 : i64} {
  func.func @_backflow_kernel_body(%arg0: i32, %arg1: memref<1xf32, #tpu.memory_space<smem>>, %arg2: memref<4x64xf32, #tpu.memory_space<vmem>>, %arg3: memref<4x64xf32, #tpu.memory_space<vmem>>) attributes {dimension_semantics = [#tpu.dimension_semantics<parallel>], iteration_bounds = array<i64: 1>, scalar_prefetch = 0 : i64, scratch_operands = 0 : i64, tpu.core_type = #tpu.core_type<tc>, window_params = [{transform_indices = @transform_0, window_bounds = array<i64: 1>}, {transform_indices = @transform_1, window_bounds = array<i64: 4, 64>}, {transform_indices = @transform_2, window_bounds = array<i64: 4, 64>}]} {
    %c0 = arith.constant 0 : index
    %c0_0 = arith.constant 0 : index
    %0 = vector.load %arg2[%c0, %c0_0] : memref<4x64xf32, #tpu.memory_space<vmem>>, vector<4x64xf32>
    %1 = tpu.iota {dimensions = array<i32: 1>} : vector<4x64xi32>
    %c9_i32 = arith.constant 9 : i32
    %c0_i32 = arith.constant 0 : i32
    %2 = arith.cmpi eq, %c9_i32, %c0_i32 : i32
    %c1_i32 = arith.constant 1 : i32
    %3 = arith.select %2, %c1_i32, %c9_i32 : i32
    %4 = vector.broadcast %3 : i32 to vector<4x64xi32>
    %5 = arith.remsi %1, %4 : vector<4x64xi32>
    %c0_i32_1 = arith.constant 0 : i32
    %6 = vector.broadcast %c0_i32_1 : i32 to vector<4x64xi32>
    %7 = arith.cmpi ne, %5, %6 : vector<4x64xi32>
    %c0_i32_2 = arith.constant 0 : i32
    %8 = vector.broadcast %c0_i32_2 : i32 to vector<4x64xi32>
    %9 = arith.cmpi slt, %5, %8 : vector<4x64xi32>
    %c0_i32_3 = arith.constant 0 : i32
    %10 = arith.cmpi slt, %3, %c0_i32_3 : i32
    %11 = vector.broadcast %10 : i1 to vector<4x64xi1>
    %12 = vector.broadcast %11 : vector<4x64xi1> to vector<4x64xi1>
    %13 = arith.xori %9, %12 : vector<4x64xi1>
    %14 = arith.andi %13, %7 : vector<4x64xi1>
    %15 = vector.broadcast %3 : i32 to vector<4x64xi32>
    %16 = arith.addi %5, %15 : vector<4x64xi32>
    %17 = arith.select %14, %16, %5 : vector<4x64xi1>, vector<4x64xi32>
    %c0_i32_4 = arith.constant 0 : i32
    %18 = vector.broadcast %c0_i32_4 : i32 to vector<4x64xi32>
    %19 = arith.cmpi eq, %17, %18 : vector<4x64xi32>
    %c0_5 = arith.constant 0 : index
    %20 = memref.load %arg1[%c0_5] : memref<1xf32, #tpu.memory_space<smem>>
    %cst = arith.constant 1.000000e+00 : f32
    %21 = vector.broadcast %cst : f32 to vector<4x64xf32>
    %22 = arith.select %19, %21, %0 : vector<4x64xi1>, vector<4x64xf32>
    %cst_6 = arith.constant 1.000000e+00 : f32
    %23 = vector.broadcast %cst_6 : f32 to vector<4x64xf32>
    %24 = arith.divf %23, %22 : vector<4x64xf32>
    %25 = vector.broadcast %20 : f32 to vector<4x64xf32>
    %26 = arith.mulf %25, %24 : vector<4x64xf32>
    %cst_7 = arith.constant 0.000000e+00 : f32
    %27 = vector.broadcast %cst_7 : f32 to vector<4x64xf32>
    %28 = arith.select %19, %27, %26 : vector<4x64xi1>, vector<4x64xf32>
    %c0_8 = arith.constant 0 : index
    %c0_9 = arith.constant 0 : index
    %29 = vector.load %arg3[%c0_8, %c0_9] : memref<4x64xf32, #tpu.memory_space<vmem>>, vector<4x64xf32>
    tpu.vector_store %arg3[%c0_8, %c0_9], %28 {strides = array<i32>} : memref<4x64xf32, #tpu.memory_space<vmem>>, vector<4x64xf32>,
    return
  }
  func.func @transform_0(%arg0: i32) -> i32 {
    %c0_i32 = arith.constant 0 : i32
    %c0_i32_0 = arith.constant 0 : i32
    return %c0_i32 : i32
  }
  func.func @transform_1(%arg0: i32) -> (i32, i32) {
    %c0_i32 = arith.constant 0 : i32
    %c0_i32_0 = arith.constant 0 : i32
    return %arg0, %c0_i32 : i32, i32
  }
  func.func @transform_2(%arg0: i32) -> (i32, i32) {
    %c0_i32 = arith.constant 0 : i32
    %c0_i32_0 = arith.constant 0 : i32
    return %arg0, %c0_i32 : i32, i32
  }
}

</mosaic_0001>

<llo_original>
// kernel: tpu_custom_call.1
$region0: #{tpu_custom_call.1}
  #allocation0 [shape = 'u32[]', space=smem, size = 0x4, offset = 0x4, fixed_abs, tag = 'smem constant byte address 0x4 - core index']
  #allocation1 [shape = 'u32[144,128]{1,0:T(1,128)}', space=vmem, size = 0x12000, scoped, tag = 'internal scratch']
  #allocation2 [shape = 'f32[1]{0:T(128)S(6)}', space=smem, size = 0x200, scoped, tag = 'scoped memory for tpu_custom_call.1']
  %s0 = inlined_call_operand.<no memory space> [shape: f32[1], index: 0, kind: input, shape index: {}]
  %s1 = inlined_call_operand.hbm [shape: f32[4,64], index: 1, kind: input, shape index: {}]
  %s2 = inlined_call_operand.hbm [shape: f32[4,64], index: 2, kind: output, shape index: {}]
  %s3 = sld [smem:[#allocation0]]
  $region22: #{tpu_custom_call.1} parent=0
    _
  %s5 = ssub.s32 1, %s3
  %s6 = scalar_select 0, %s5, %s3
  %7 = sst [smem:[#allocation2]] %s0
  $region1: #{tpu_custom_call.1} parent=0
    #allocation3 [shape = 'u8[2048]{0}', space=vmem, size = 0x800, scoped, tag = 'input window, operand 1, single buffered']
    #allocation4 [shape = 's32[1]{0}', space=sflag, size = 0x4, scoped, tag = 'scoped memory for tpu_custom_call.1']
    #allocation5 [shape = 's32[1]{0}', space=sflag, size = 0x4, scoped, tag = 'scoped memory for tpu_custom_call.1']
    #allocation6 [shape = 'u8[2048]{0}', space=vmem, size = 0x800, scoped, tag = 'output window, operand 0, single buffered']
    %8 = vsyncpa [#allocation4], 0
    %9 = vsyncpa [#allocation5], 0
    // Predicated region
    $region2: #{tpu_custom_call.1} parent=1 // pred_check
      _
    $region3: #{tpu_custom_call.1} parent=1 // pred_check_branch
      %11 = sbr.rel (0) target = $region5
    $region4: #{tpu_custom_call.1} parent=1 // pred_region
      _
    $region5: #{tpu_custom_call.1} parent=1 // pred_fallthru
      _
    // Predicated region
    $region6: #{tpu_custom_call.1} parent=1 // pred_check
      _
    $region7: #{tpu_custom_call.1} parent=1 // pred_check_branch
      %13 = sbr.rel (0) target = $region9
    $region8: #{tpu_custom_call.1} parent=1 // pred_region
      %s15 = ssub.s32 64, 64
      %16 = vsyncadd [#allocation4], %s15
      %s18 = sshll.u32 [#allocation3], 4
      %s19 = int_to_ptr.vmem [resolvable:$true] %s18
      %21 = dma.hbm_to_vmem [thread:$0]  %s1, 64, %s19, [#allocation4]
    $region9: #{tpu_custom_call.1} parent=1 // pred_fallthru
      _
    // Predicated region
    $region10: #{tpu_custom_call.1} parent=1 // pred_check
      _
    $region11: #{tpu_custom_call.1} parent=1 // pred_check_branch
      %23 = sbr.rel (0) target = $region13
    $region12: #{tpu_custom_call.1} parent=1 // pred_region
      %24 = dma.done [#allocation4], 64
    $region13: #{tpu_custom_call.1} parent=1 // pred_fallthru
      _
    %v25 = vld [vmem:[#allocation3] sm:$0xf]
    %v26 = vlaneseq
    %v27 = vand.u32 %v26, 127
    %vm28 = vcmp.lt.s32.totalorder %v27, 0
    %v29 = vsub.s32 0, %v27
    %v30 = vsel %vm28, %v29, %v27
    %v31 = vmul.u32.u64.compose %v30, 3817748708
    %v32 = vextract.low.u32 %v31
    %v33 = vextract.high.u32 %v31
    %v34 = vshrl.u32 %v33, 3
    %v35 = vmul.u32 %v34, 9
    %v36 = vsub.s32 %v30, %v35
    %v37 = vsub.s32 0, %v36
    %v38 = vsel %vm28, %v37, %v36
    %vm39 = vcmp.ne.s32.totalorder %v38, 0
    %vm40 = vcmp.lt.s32.totalorder %v38, 0
    %vm41 = vmand %vm40, %vm39
    %v42 = vadd.s32 %v38, 9
    %v43 = vsel %vm41, %v42, %v38
    %vm44 = vcmp.eq.s32.totalorder %v43, 0
    %s45 = sld [smem:[#allocation2]]
    %v46 = vsel %vm44, 1.0, %v25
    %v47 = vrcp.pop %v46
    %v48 = vmul.f32 1.0, %v47
    %v49 = vstv %s45
    %v50 = vmul.f32 %v49, %v48
    %v51 = vsel %vm44, 0.0, %v50
    %vm52 = vcmask 519168
    %53 = vst.msk [vmem:[#allocation6] sm:$0xf] %vm52, %v51
    // Predicated region
    $region14: #{tpu_custom_call.1} parent=1 // pred_check
      _
    $region15: #{tpu_custom_call.1} parent=1 // pred_check_branch
      %55 = sbr.rel (0) target = $region17
    $region16: #{tpu_custom_call.1} parent=1 // pred_region
      %s57 = ssub.s32 64, 64
      %58 = vsyncadd [#allocation5], %s57
      %s60 = sshll.u32 [#allocation6], 4
      %s61 = int_to_ptr.vmem [resolvable:$true] %s60
      %63 = dma.vmem_to_hbm [thread:$0]  %s61, 64, %s2, [#allocation5]
    $region17: #{tpu_custom_call.1} parent=1 // pred_fallthru
      _
    // Predicated region
    $region18: #{tpu_custom_call.1} parent=1 // pred_check
      _
    $region19: #{tpu_custom_call.1} parent=1 // pred_check_branch
      %65 = sbr.rel (0) target = $region21
    $region20: #{tpu_custom_call.1} parent=1 // pred_region
      %66 = dma.done [#allocation5], 64
    $region21: #{tpu_custom_call.1} parent=1 // pred_fallthru
      _
    %67 = vsyncpa [#allocation4], 1
    %68 = vsyncpa [#allocation5], 1

</llo_original>
